<compile_context>
chip_gen: v6e
topology: v6e:2x2x1
jax: 0.10.0
libtpu: 0.0.40
codegen_flags: <defaults>
</compile_context>

<pallas_src>
import jax
import jax.numpy as jnp
from jax import lax
from jax.experimental import pallas as pl
from jax.experimental.pallas import tpu as pltpu

DROPOUT_P = 0.1
# drop if (hash & 0x7fffffff) < p * 2^31
_DROP_THRESHOLD = int(DROPOUT_P * (1 << 31))


def _i32(v):
    """Python int -> int32 constant with two's-complement wrap."""
    v &= 0xFFFFFFFF
    if v >= (1 << 31):
        v -= 1 << 32
    return jnp.int32(v)


def _mqnn_kernel(seed_ref, x_ref, w1_ref, b1_ref, w2_ref, b2_ref,
                 wh_ref, bh_ref, out_ref):
    # ---- backbone layer 0: Linear -> ReLU ----
    x = x_ref[...]
    h1 = jnp.dot(x, w1_ref[...], preferred_element_type=jnp.float32) + b1_ref[...]
    h1 = jnp.maximum(h1, 0.0)

    # ---- MC dropout (always active, p = 0.1) ----
    # Counter-based hash over (seed, global element index): unique mask per
    # batch tile (program_id enters via the global row index), all int32 VPU ops.
    tb, h1_dim = h1.shape
    row = lax.broadcasted_iota(jnp.int32, (tb, h1_dim), 0) + pl.program_id(0) * tb
    col = lax.broadcasted_iota(jnp.int32, (tb, h1_dim), 1)
    idx = row * jnp.int32(h1_dim) + col

    z = idx * _i32(0x9E3779B9) + seed_ref[0]          # Weyl step + seed
    z = z ^ lax.shift_right_logical(z, 16)            # lowbias32-style finalizer
    z = z * _i32(0x7FEB352D)
    z = z ^ lax.shift_right_logical(z, 15)
    z = z * _i32(0x846CA68B)
    z = z ^ lax.shift_right_logical(z, 16)

    u = z & _i32(0x7FFFFFFF)                          # uniform in [0, 2^31)
    keep = u >= jnp.int32(_DROP_THRESHOLD)
    h1 = jnp.where(keep, h1, 0.0)
    # NOTE: the 1/(1-p) rescale is pre-folded into w2 (prepare_params), so no
    # extra per-element multiply here.

    # ---- backbone layer 1: Linear -> ReLU (no dropout after last hidden) ----
    h2 = jnp.dot(h1, w2_ref[...], preferred_element_type=jnp.float32) + b2_ref[...]
    h2 = jnp.maximum(h2, 0.0)

    # ---- fused quantile heads: [hidden, Q] matmul + bias ----
    out_ref[...] = (jnp.dot(h2, wh_ref[...], preferred_element_type=jnp.float32)
                    + bh_ref[...])


def _round_up(n, m):
    return ((n + m - 1) // m) * m


def mqnn_forward(x, params, seed, *, tile_b=256):
    """MQNN forward pass. Returns a [B, Q] array (one column per quantile head)."""
    w1, b1, w2, b2, wh, bh = params
    B, D = x.shape
    Q = wh.shape[1]

    # Batch tiling: fill the MXU M axis for big B; single 8-aligned tile for small B.
    tb = min(tile_b, _round_up(B, 8))
    Bp = _round_up(B, tb)
    xp = jnp.pad(x, ((0, Bp - B), (0, 0))) if Bp != B else x
    n_tiles = Bp // tb

    seed_arr = jnp.asarray([seed], dtype=jnp.int32)

    def _const(shape):
        # Weights/biases: same (whole-array) block every grid step -> VMEM resident.
        return pl.BlockSpec(shape, lambda i, s: (0, 0))

    grid_spec = pltpu.PrefetchScalarGridSpec(
        num_scalar_prefetch=1,                       # seed -> SMEM
        grid=(n_tiles,),
        in_specs=[
            pl.BlockSpec((tb, D), lambda i, s: (i, 0)),   # x: tiled over batch
            _const(w1.shape), _const(b1.shape),
            _const(w2.shape), _const(b2.shape),
            _const(wh.shape), _const(bh.shape),
        ],
        out_specs=pl.BlockSpec((tb, Q), lambda i, s: (i, 0)),
    )

    out = pl.pallas_call(
        _mqnn_kernel,
        out_shape=jax.ShapeDtypeStruct((Bp, Q), jnp.float32),
        grid_spec=grid_spec,
        compiler_params=pltpu.CompilerParams(
            dimension_semantics=("parallel",)),      # shards batch tiles on v7x's 2 TCs
    )(seed_arr, xp, w1, b1, w2, b2, wh, bh)

    return out[:B]


def mqnn_forward_heads(x, params, seed, **kw):
    """Matches PyTorch MQNN.forward(): list of per-quantile [B, 1] arrays."""
    out = mqnn_forward(x, params, seed, **kw)
    return [out[:, i:i + 1] for i in range(out.shape[1])]


def init_params(key, input_dim, hidden=(32, 32), n_quantiles=3):
    """Deterministic parameter init (shapes match MQNN's nn.Linear layers).

    Weights are stored [in, out] (transpose of torch's [out, in]); biases [1, out].
    The Q Linear(hidden, 1) heads are fused into a single [hidden, Q] / [1, Q].
    """
    k1, k2, k3, k4, k5, k6 = jax.random.split(key, 6)
    h1, h2 = hidden
    w1 = jax.random.normal(k1, (input_dim, h1), jnp.float32) * 0.1
    b1 = jax.random.normal(k2, (1, h1), jnp.float32) * 0.1
    w2 = jax.random.normal(k3, (h1, h2), jnp.float32) * 0.1
    b2 = jax.random.normal(k4, (1, h2), jnp.float32) * 0.1
    wh = jax.random.normal(k5, (h2, n_quantiles), jnp.float32) * 0.1
    bh = jax.random.normal(k6, (1, n_quantiles), jnp.float32) * 0.1
    return (w1, b1, w2, b2, wh, bh)


def prepare_params(raw_params, dropout_p=DROPOUT_P):
    """One-time (outside the hot path) fold of the inverted-dropout 1/(1-p) rescale
    into w2, since dropout is applied to the input of layer 1:
        (h1 * s) @ w2 == h1 @ (s * w2)."""
    w1, b1, w2, b2, wh, bh = raw_params
    scale = 1.0 / (1.0 - dropout_p)
    return (w1, b1, w2 * scale, b2, wh, bh)


if __name__ == "__main__":
    key = jax.random.PRNGKey(0)
    kx, kp = jax.random.split(key)

    batch = 8
    input_dim = 16
    quantiles = [0.1, 0.5, 0.9]          # -> 3 quantile heads

    x = jax.random.normal(kx, (batch, input_dim), jnp.float32)
    raw_params = init_params(kp, input_dim, hidden=(32, 32),
                             n_quantiles=len(quantiles))
    params = prepare_params(raw_params)

    outputs = mqnn_forward_heads(x, params, seed=1234)
    outputs = jax.block_until_ready(outputs)

    assert len(outputs) == len(quantiles)
    for o in outputs:
        assert o.shape == (batch, 1)
        assert o.dtype == jnp.float32
        assert bool(jnp.all(jnp.isfinite(o)))

    print("KERNEL_OK")
</pallas_src>

<mosaic_0001>
module attributes {stable_mosaic.version = 11 : i64} {
  func.func @_mqnn_kernel(%arg0: i32, %arg1: memref<1xi32, #tpu.memory_space<smem>>, %arg2: memref<8x16xf32, #tpu.memory_space<vmem>>, %arg3: memref<16x32xf32, #tpu.memory_space<vmem>>, %arg4: memref<1x32xf32, #tpu.memory_space<vmem>>, %arg5: memref<32x32xf32, #tpu.memory_space<vmem>>, %arg6: memref<1x32xf32, #tpu.memory_space<vmem>>, %arg7: memref<32x3xf32, #tpu.memory_space<vmem>>, %arg8: memref<1x3xf32, #tpu.memory_space<vmem>>, %arg9: memref<8x3xf32, #tpu.memory_space<vmem>>) attributes {dimension_semantics = [#tpu.dimension_semantics<parallel>], iteration_bounds = array<i64: 1>, scalar_prefetch = 1 : i64, scratch_operands = 0 : i64, tpu.core_type = #tpu.core_type<tc>, window_params = [{transform_indices = @transform_0, window_bounds = array<i64: 8, 16>}, {pipeline_mode = #tpu.pipeline_mode<synchronous>, transform_indices = @transform_1, window_bounds = array<i64: 16, 32>}, {pipeline_mode = #tpu.pipeline_mode<synchronous>, transform_indices = @transform_2, window_bounds = array<i64: 1, 32>}, {pipeline_mode = #tpu.pipeline_mode<synchronous>, transform_indices = @transform_3, window_bounds = array<i64: 32, 32>}, {pipeline_mode = #tpu.pipeline_mode<synchronous>, transform_indices = @transform_4, window_bounds = array<i64: 1, 32>}, {pipeline_mode = #tpu.pipeline_mode<synchronous>, transform_indices = @transform_5, window_bounds = array<i64: 32, 3>}, {pipeline_mode = #tpu.pipeline_mode<synchronous>, transform_indices = @transform_6, window_bounds = array<i64: 1, 3>}, {transform_indices = @transform_7, window_bounds = array<i64: 8, 3>}]} {
    %c0 = arith.constant 0 : index
    %c0_0 = arith.constant 0 : index
    %0 = vector.load %arg2[%c0, %c0_0] : memref<8x16xf32, #tpu.memory_space<vmem>>, vector<8x16xf32>
    %c0_1 = arith.constant 0 : index
    %c0_2 = arith.constant 0 : index
    %1 = vector.load %arg3[%c0_1, %c0_2] : memref<16x32xf32, #tpu.memory_space<vmem>>, vector<16x32xf32>
    %cst = arith.constant dense<0.000000e+00> : vector<8x32xf32>
    %2 = tpu.matmul %0, %1, %cst {dimension_numbers = #tpu.dot_dimension_numbers<[1], [0], [0], [1], [0, 0, 1, 1], [], []>} : vector<8x16xf32>, vector<16x32xf32>, vector<8x32xf32> -> vector<8x32xf32>
    %c0_3 = arith.constant 0 : index
    %c0_4 = arith.constant 0 : index
    %3 = vector.load %arg4[%c0_3, %c0_4] : memref<1x32xf32, #tpu.memory_space<vmem>>, vector<1x32xf32>
    %4 = vector.broadcast %3 : vector<1x32xf32> to vector<8x32xf32>
    %5 = arith.addf %2, %4 : vector<8x32xf32>
    %cst_5 = arith.constant 0.000000e+00 : f32
    %6 = vector.broadcast %cst_5 : f32 to vector<8x32xf32>
    %7 = arith.maximumf %5, %6 : vector<8x32xf32>
    %8 = tpu.iota {dimensions = array<i32: 0>} : vector<8x32xi32>
    %c8_i32 = arith.constant 8 : i32
    %9 = arith.muli %arg0, %c8_i32 : i32
    %10 = vector.broadcast %9 : i32 to vector<8x32xi32>
    %11 = arith.addi %8, %10 : vector<8x32xi32>
    %12 = tpu.iota {dimensions = array<i32: 1>} : vector<8x32xi32>
    %c32_i32 = arith.constant 32 : i32
    %13 = vector.broadcast %c32_i32 : i32 to vector<8x32xi32>
    %14 = arith.muli %11, %13 : vector<8x32xi32>
    %15 = arith.addi %14, %12 : vector<8x32xi32>
    %c-1640531527_i32 = arith.constant -1640531527 : i32
    %16 = vector.broadcast %c-1640531527_i32 : i32 to vector<8x32xi32>
    %17 = arith.muli %15, %16 : vector<8x32xi32>
    %c0_6 = arith.constant 0 : index
    %18 = memref.load %arg1[%c0_6] : memref<1xi32, #tpu.memory_space<smem>>
    %19 = vector.broadcast %18 : i32 to vector<8x32xi32>
    %20 = arith.addi %17, %19 : vector<8x32xi32>
    %c16_i32 = arith.constant 16 : i32
    %21 = vector.broadcast %c16_i32 : i32 to vector<8x32xi32>
    %22 = arith.shrui %20, %21 : vector<8x32xi32>
    %23 = arith.xori %20, %22 : vector<8x32xi32>
    %c2146121005_i32 = arith.constant 2146121005 : i32
    %24 = vector.broadcast %c2146121005_i32 : i32 to vector<8x32xi32>
    %25 = arith.muli %23, %24 : vector<8x32xi32>
    %c15_i32 = arith.constant 15 : i32
    %26 = vector.broadcast %c15_i32 : i32 to vector<8x32xi32>
    %27 = arith.shrui %25, %26 : vector<8x32xi32>
    %28 = arith.xori %25, %27 : vector<8x32xi32>
    %c-2073254261_i32 = arith.constant -2073254261 : i32
    %29 = vector.broadcast %c-2073254261_i32 : i32 to vector<8x32xi32>
    %30 = arith.muli %28, %29 : vector<8x32xi32>
    %c16_i32_7 = arith.constant 16 : i32
    %31 = vector.broadcast %c16_i32_7 : i32 to vector<8x32xi32>
    %32 = arith.shrui %30, %31 : vector<8x32xi32>
    %33 = arith.xori %30, %32 : vector<8x32xi32>
    %c2147483647_i32 = arith.constant 2147483647 : i32
    %34 = vector.broadcast %c2147483647_i32 : i32 to vector<8x32xi32>
    %35 = arith.andi %33, %34 : vector<8x32xi32>
    %c214748364_i32 = arith.constant 214748364 : i32
    %36 = vector.broadcast %c214748364_i32 : i32 to vector<8x32xi32>
    %37 = arith.cmpi sge, %35, %36 : vector<8x32xi32>
    %cst_8 = arith.constant 0.000000e+00 : f32
    %38 = vector.broadcast %cst_8 : f32 to vector<8x32xf32>
    %39 = arith.select %37, %7, %38 : vector<8x32xi1>, vector<8x32xf32>
    %c0_9 = arith.constant 0 : index
    %c0_10 = arith.constant 0 : index
    %40 = vector.load %arg5[%c0_9, %c0_10] : memref<32x32xf32, #tpu.memory_space<vmem>>, vector<32x32xf32>
    %cst_11 = arith.constant dense<0.000000e+00> : vector<8x32xf32>
    %41 = tpu.matmul %39, %40, %cst_11 {dimension_numbers = #tpu.dot_dimension_numbers<[1], [0], [0], [1], [0, 0, 1, 1], [], []>} : vector<8x32xf32>, vector<32x32xf32>, vector<8x32xf32> -> vector<8x32xf32>
    %c0_12 = arith.constant 0 : index
    %c0_13 = arith.constant 0 : index
    %42 = vector.load %arg6[%c0_12, %c0_13] : memref<1x32xf32, #tpu.memory_space<vmem>>, vector<1x32xf32>
    %43 = vector.broadcast %42 : vector<1x32xf32> to vector<8x32xf32>
    %44 = arith.addf %41, %43 : vector<8x32xf32>
    %cst_14 = arith.constant 0.000000e+00 : f32
    %45 = vector.broadcast %cst_14 : f32 to vector<8x32xf32>
    %46 = arith.maximumf %44, %45 : vector<8x32xf32>
    %c0_15 = arith.constant 0 : index
    %c0_16 = arith.constant 0 : index
    %47 = vector.load %arg7[%c0_15, %c0_16] : memref<32x3xf32, #tpu.memory_space<vmem>>, vector<32x3xf32>
    %cst_17 = arith.constant dense<0.000000e+00> : vector<8x3xf32>
    %48 = tpu.matmul %46, %47, %cst_17 {dimension_numbers = #tpu.dot_dimension_numbers<[1], [0], [0], [1], [0, 0, 1, 1], [], []>} : vector<8x32xf32>, vector<32x3xf32>, vector<8x3xf32> -> vector<8x3xf32>
    %c0_18 = arith.constant 0 : index
    %c0_19 = arith.constant 0 : index
    %49 = vector.load %arg8[%c0_18, %c0_19] : memref<1x3xf32, #tpu.memory_space<vmem>>, vector<1x3xf32>
    %50 = vector.broadcast %49 : vector<1x3xf32> to vector<8x3xf32>
    %51 = arith.addf %48, %50 : vector<8x3xf32>
    %c0_20 = arith.constant 0 : index
    %c0_21 = arith.constant 0 : index
    %52 = vector.load %arg9[%c0_20, %c0_21] : memref<8x3xf32, #tpu.memory_space<vmem>>, vector<8x3xf32>
    tpu.vector_store %arg9[%c0_20, %c0_21], %51 {strides = array<i32>} : memref<8x3xf32, #tpu.memory_space<vmem>>, vector<8x3xf32>,
    return
  }
  func.func @transform_0(%arg0: i32, %arg1: memref<1xi32, #tpu.memory_space<smem>>) -> (i32, i32) {
    %c0_i32 = arith.constant 0 : i32
    %c0_i32_0 = arith.constant 0 : i32
    return %arg0, %c0_i32 : i32, i32
  }
  func.func @transform_1(%arg0: i32, %arg1: memref<1xi32, #tpu.memory_space<smem>>) -> (i32, i32) {
    %c0_i32 = arith.constant 0 : i32
    %c0_i32_0 = arith.constant 0 : i32
    %c0_i32_1 = arith.constant 0 : i32
    return %c0_i32, %c0_i32_0 : i32, i32
  }
  func.func @transform_2(%arg0: i32, %arg1: memref<1xi32, #tpu.memory_space<smem>>) -> (i32, i32) {
    %c0_i32 = arith.constant 0 : i32
    %c0_i32_0 = arith.constant 0 : i32
    %c0_i32_1 = arith.constant 0 : i32
    return %c0_i32, %c0_i32_0 : i32, i32
  }
  func.func @transform_3(%arg0: i32, %arg1: memref<1xi32, #tpu.memory_space<smem>>) -> (i32, i32) {
    %c0_i32 = arith.constant 0 : i32
    %c0_i32_0 = arith.constant 0 : i32
    %c0_i32_1 = arith.constant 0 : i32
    return %c0_i32, %c0_i32_0 : i32, i32
  }
  func.func @transform_4(%arg0: i32, %arg1: memref<1xi32, #tpu.memory_space<smem>>) -> (i32, i32) {
    %c0_i32 = arith.constant 0 : i32
    %c0_i32_0 = arith.constant 0 : i32
    %c0_i32_1 = arith.constant 0 : i32
    return %c0_i32, %c0_i32_0 : i32, i32
  }
  func.func @transform_5(%arg0: i32, %arg1: memref<1xi32, #tpu.memory_space<smem>>) -> (i32, i32) {
    %c0_i32 = arith.constant 0 : i32
    %c0_i32_0 = arith.constant 0 : i32
    %c0_i32_1 = arith.constant 0 : i32
    return %c0_i32, %c0_i32_0 : i32, i32
  }
  func.func @transform_6(%arg0: i32, %arg1: memref<1xi32, #tpu.memory_space<smem>>) -> (i32, i32) {
    %c0_i32 = arith.constant 0 : i32
    %c0_i32_0 = arith.constant 0 : i32
    %c0_i32_1 = arith.constant 0 : i32
    return %c0_i32, %c0_i32_0 : i32, i32
  }
  func.func @transform_7(%arg0: i32, %arg1: memref<1xi32, #tpu.memory_space<smem>>) -> (i32, i32) {
    %c0_i32 = arith.constant 0 : i32
    %c0_i32_0 = arith.constant 0 : i32
    return %arg0, %c0_i32 : i32, i32
  }
}

</mosaic_0001>

<llo_original>
// kernel: tpu_custom_call.1
$region0: #{tpu_custom_call.1}
  #allocation0 [shape = 'u32[]', space=smem, size = 0x4, offset = 0x4, fixed_abs, tag = 'smem constant byte address 0x4 - core index']
  #allocation1 [shape = 'u32[144,128]{1,0:T(1,128)}', space=vmem, size = 0x12000, scoped, tag = 'internal scratch']
  #allocation2 [shape = 's32[1]{0}', space=sflag, size = 0x4, scoped, tag = 'scoped memory for tpu_custom_call.1']
  #allocation3 [shape = 's32[1]{0:T(128)S(6)}', space=smem, size = 0x200, scoped, tag = 'prefetched SMEM operand 0']
  %s0 = inlined_call_operand.<no memory space> [shape: s32[1], index: 0, kind: input, shape index: {}]
  %s1 = inlined_call_operand.vmem [shape: f32[8,16], index: 1, kind: input, shape index: {}]
  %s2 = inlined_call_operand.hbm [shape: f32[16,32], index: 2, kind: input, shape index: {}]
  %s3 = inlined_call_operand.vmem [shape: f32[1,32], index: 3, kind: input, shape index: {}]
  %s4 = inlined_call_operand.vmem [shape: f32[32,32], index: 4, kind: input, shape index: {}]
  %s5 = inlined_call_operand.hbm [shape: f32[1,32], index: 5, kind: input, shape index: {}]
  %s6 = inlined_call_operand.vmem [shape: f32[32,3], index: 6, kind: input, shape index: {}]
  %s7 = inlined_call_operand.vmem [shape: f32[1,3], index: 7, kind: input, shape index: {}]
  %s8 = inlined_call_operand.vmem [shape: f32[8,3], index: 8, kind: output, shape index: {}]
  %s9 = sld [smem:[#allocation0]]
  $region46: #{tpu_custom_call.1} parent=0
    _
  %s11 = ssub.s32 1, %s9
  %s12 = scalar_select 0, %s11, %s9
  %13 = sst [smem:[#allocation3]] %s0
  $region1: #{tpu_custom_call.1} parent=0
    #allocation4 [shape = 'u8[8192]{0}', space=vmem, size = 0x2000, scoped, tag = 'input window, operand 2, single buffered']
    #allocation5 [shape = 's32[1]{0}', space=sflag, size = 0x4, scoped, tag = 'scoped memory for tpu_custom_call.1']
    #allocation6 [shape = 'u8[512]{0}', space=vmem, size = 0x400, scoped, tag = 'input window, operand 5, single buffered']
    #allocation7 [shape = 's32[1]{0}', space=sflag, size = 0x4, scoped, tag = 'scoped memory for tpu_custom_call.1']
    %14 = vsyncpa [#allocation5], 0
    %15 = vsyncpa [#allocation7], 0
    // Predicated region
    $region2: #{tpu_custom_call.1} parent=1 // pred_check
      _
    $region3: #{tpu_custom_call.1} parent=1 // pred_check_branch
      %17 = sbr.rel (0) target = $region5
    $region4: #{tpu_custom_call.1} parent=1 // pred_region
      _
    $region5: #{tpu_custom_call.1} parent=1 // pred_fallthru
      _
    // Predicated region
    $region6: #{tpu_custom_call.1} parent=1 // pred_check
      _
    $region7: #{tpu_custom_call.1} parent=1 // pred_check_branch
      %19 = sbr.rel (0) target = $region9
    $region8: #{tpu_custom_call.1} parent=1 // pred_region
      %s21 = ssub.s32 256, 256
      %22 = vsyncadd [#allocation5], %s21
      %s23 = sshll.u32 [#allocation4], 4
      %s24 = int_to_ptr.vmem [resolvable:$true] %s23
      %29 = dma.hbm_to_vmem [thread:$0]  %s2, 256, %s24, [#allocation5], 128, 128, 8
    $region9: #{tpu_custom_call.1} parent=1 // pred_fallthru
      _
    // Predicated region
    $region10: #{tpu_custom_call.1} parent=1 // pred_check
      _
    $region11: #{tpu_custom_call.1} parent=1 // pred_check_branch
      %31 = sbr.rel (0) target = $region13
    $region12: #{tpu_custom_call.1} parent=1 // pred_region
      _
    $region13: #{tpu_custom_call.1} parent=1 // pred_fallthru
      _
    // Predicated region
    $region14: #{tpu_custom_call.1} parent=1 // pred_check
      _
    $region15: #{tpu_custom_call.1} parent=1 // pred_check_branch
      %33 = sbr.rel (0) target = $region17
    $region16: #{tpu_custom_call.1} parent=1 // pred_region
      _
    $region17: #{tpu_custom_call.1} parent=1 // pred_fallthru
      _
    // Predicated region
    $region18: #{tpu_custom_call.1} parent=1 // pred_check
      _
    $region19: #{tpu_custom_call.1} parent=1 // pred_check_branch
      %35 = sbr.rel (0) target = $region21
    $region20: #{tpu_custom_call.1} parent=1 // pred_region
      %s37 = ssub.s32 16, 16
      %38 = vsyncadd [#allocation7], %s37
      %s40 = sshll.u32 [#allocation6], 4
      %s41 = int_to_ptr.vmem [resolvable:$true] %s40
      %43 = dma.hbm_to_vmem [thread:$0]  %s5, 16, %s41, [#allocation7]
    $region21: #{tpu_custom_call.1} parent=1 // pred_fallthru
      _
    // Predicated region
    $region22: #{tpu_custom_call.1} parent=1 // pred_check
      _
    $region23: #{tpu_custom_call.1} parent=1 // pred_check_branch
      %45 = sbr.rel (0) target = $region25
    $region24: #{tpu_custom_call.1} parent=1 // pred_region
      _
    $region25: #{tpu_custom_call.1} parent=1 // pred_fallthru
      _
    // Predicated region
    $region26: #{tpu_custom_call.1} parent=1 // pred_check
      _
    $region27: #{tpu_custom_call.1} parent=1 // pred_check_branch
      %47 = sbr.rel (0) target = $region29
    $region28: #{tpu_custom_call.1} parent=1 // pred_region
      _
    $region29: #{tpu_custom_call.1} parent=1 // pred_fallthru
      _
    // Predicated region
    $region30: #{tpu_custom_call.1} parent=1 // pred_check
      _
    $region31: #{tpu_custom_call.1} parent=1 // pred_check_branch
      %49 = sbr.rel (0) target = $region33
    $region32: #{tpu_custom_call.1} parent=1 // pred_region
      %50 = dma.done [#allocation5], 256
    $region33: #{tpu_custom_call.1} parent=1 // pred_fallthru
      _
    // Predicated region
    $region34: #{tpu_custom_call.1} parent=1 // pred_check
      _
    $region35: #{tpu_custom_call.1} parent=1 // pred_check_branch
      %52 = sbr.rel (0) target = $region37
    $region36: #{tpu_custom_call.1} parent=1 // pred_region
      %53 = dma.done [#allocation7], 16
    $region37: #{tpu_custom_call.1} parent=1 // pred_fallthru
      _
    %v54 = vld [vmem:[%s1] sm:$0xff]
    %v55 = vld [vmem:[#allocation4] sm:$0xff]
    %v56 = vld [vmem:[#allocation4 + $0x8] sm:$0xff]
    %v57 = vld [vmem:[%s3] sm:$0x1]
    %v59 = vlaneseq
    %v60 = vshrl.u32 %v59, 7
    %v61 = vsub.s32 0, %v60
    %v62 = vrot.slane %v57, %v61
    %vm64 = vcmask 130048
    %v66 = vsel %vm64, %v54, 0
    %68 = vmatprep.subr.mxu0 0.0
    %69 = vmatpush1.msra.mxu0 0.0
    %70 = vmatprep.subr.mxu0 0.0
    %71 = vmatpush1.msra.mxu0 0.0
    %72 = vmatprep.subr.mxu0 0.0
    %73 = vmatpush1.msra.mxu0 0.0
    %74 = vmatprep.subr.mxu0 0.0
    %75 = vmatpush1.msra.mxu0 0.0
    %76 = vmatprep.subr.mxu0 0.0
    %77 = vmatpush1.msra.mxu0 0.0
    %78 = vmatprep.subr.mxu0 0.0
    %79 = vmatpush1.msra.mxu0 0.0
    %80 = vmatprep.subr.mxu0 0.0
    %81 = vmatpush1.msra.mxu0 0.0
    %82 = vmatprep.subr.mxu0 0.0
    %83 = vmatpush1.msra.mxu0 0.0
    %84 = vmatprep.subr.mxu0 0.0
    %85 = vmatpush1.msra.mxu0 0.0
    %86 = vmatprep.subr.mxu0 0.0
    %87 = vmatpush1.msra.mxu0 0.0
    %88 = vmatprep.subr.mxu0 0.0
    %89 = vmatpush1.msra.mxu0 0.0
    %90 = vmatprep.subr.mxu0 0.0
    %91 = vmatpush1.msra.mxu0 0.0
    %92 = vmatprep.subr.mxu0 0.0
    %93 = vmatpush1.msra.mxu0 0.0
    %94 = vmatprep.subr.mxu0 0.0
    %95 = vmatpush1.msra.mxu0 0.0
    %96 = vmatprep.subr.mxu0 0.0
    %97 = vmatpush1.msra.mxu0 %v56
    %98 = vmatprep.subr.mxu0 0.0
    %99 = vmatpush1.msra.mxu0 %v55
    %100 = vmatprep.subr.mxu0 0.0
    %101 = vmatpush2.msra.mxu0 0.0
    %102 = vmatprep.subr.mxu0 0.0
    %103 = vmatpush2.msra.mxu0 0.0
    %104 = vmatprep.subr.mxu0 0.0
    %105 = vmatpush2.msra.mxu0 0.0
    %106 = vmatprep.subr.mxu0 0.0
    %107 = vmatpush2.msra.mxu0 0.0
    %108 = vmatprep.subr.mxu0 0.0
    %109 = vmatpush2.msra.mxu0 0.0
    %110 = vmatprep.subr.mxu0 0.0
    %111 = vmatpush2.msra.mxu0 0.0
    %112 = vmatprep.subr.mxu0 0.0
    %113 = vmatpush2.msra.mxu0 0.0
    %114 = vmatprep.subr.mxu0 0.0
    %115 = vmatpush2.msra.mxu0 0.0
    %116 = vmatprep.subr.mxu0 0.0
    %117 = vmatpush2.msra.mxu0 0.0
    %118 = vmatprep.subr.mxu0 0.0
    %119 = vmatpush2.msra.mxu0 0.0
    %120 = vmatprep.subr.mxu0 0.0
    %121 = vmatpush2.msra.mxu0 0.0
    %122 = vmatprep.subr.mxu0 0.0
    %123 = vmatpush2.msra.mxu0 0.0
    %124 = vmatprep.subr.mxu0 0.0
    %125 = vmatpush2.msra.mxu0 0.0
    %126 = vmatprep.subr.mxu0 0.0
    %127 = vmatpush2.msra.mxu0 0.0
    %128 = vmatprep.subr.mxu0 0.0
    %129 = vmatpush2.msra.mxu0 0.0
    %130 = vmatprep.subr.mxu0 0.0
    %131 = vmatpush2.msra.mxu0 0.0
    %132 = vmatprep.mubr.f32.mxu0 0.0
    %133 = vmatmul.mubr.f32.gmra.mxu0 %v66
    %v134 = vpop.f32.mrf.mxu0
    %v135 = vadd.f32 %v62, %v134
    %v136 = vpop.f32.mrf.mxu0
    %137 = vdwg.mxu0
    %v138 = vmax.f32 %v135, 0.0
    %v139 = vlaneseq
    %v140 = vshrl.u32 %v139, 7
    %s141 = smul.u32 0, 8
    %v142 = vstv %s141
    %v143 = vadd.s32 %v140, %v142
    %v144 = vlaneseq
    %v145 = vand.u32 %v144, 127
    %v146 = vmul.u32 %v143, 32
    %v147 = vadd.s32 %v146, %v145
    %v148 = vmul.u32 %v147, 2654435769
    %s149 = sld [smem:[#allocation3]]
    %v150 = vstv %s149
    %v151 = vadd.s32 %v148, %v150
    %v152 = vshrl.u32 %v151, 16
    %v153 = vxor.u32 %v151, %v152
    %v154 = vmul.u32 %v153, 2146121005
    %v155 = vshrl.u32 %v154, 15
    %v156 = vxor.u32 %v154, %v155
    %v157 = vmul.u32 %v156, 2221713035
    %v158 = vshrl.u32 %v157, 16
    %v159 = vxor.u32 %v157, %v158
    %v160 = vand.u32 %v159, 2147483647
    %vm161 = vcmp.ge.s32.totalorder %v160, 214748364
    %v162 = vsel %vm161, %v138, 0.0
    %v163 = vld [vmem:[%s4] sm:$0xff]
    %v164 = vld [vmem:[%s4 + $0x8] sm:$0xff]
    %v165 = vld [vmem:[%s4 + $0x10] sm:$0xff]
    %v166 = vld [vmem:[%s4 + $0x18] sm:$0xff]
    %v167 = vld [vmem:[#allocation6] sm:$0x1]
    %v169 = vlaneseq
    %v170 = vshrl.u32 %v169, 7
    %v171 = vsub.s32 0, %v170
    %v172 = vrot.slane %v167, %v171
    %vm174 = vcmask 261120
    %v176 = vsel %vm174, %v162, 0
    %178 = vmatprep.subr.mxu0 0.0
    %179 = vmatpush1.msra.mxu0 0.0
    %180 = vmatprep.subr.mxu0 0.0
    %181 = vmatpush1.msra.mxu0 0.0
    %182 = vmatprep.subr.mxu0 0.0
    %183 = vmatpush1.msra.mxu0 0.0
    %184 = vmatprep.subr.mxu0 0.0
    %185 = vmatpush1.msra.mxu0 0.0
    %186 = vmatprep.subr.mxu0 0.0
    %187 = vmatpush1.msra.mxu0 0.0
    %188 = vmatprep.subr.mxu0 0.0
    %189 = vmatpush1.msra.mxu0 0.0
    %190 = vmatprep.subr.mxu0 0.0
    %191 = vmatpush1.msra.mxu0 0.0
    %192 = vmatprep.subr.mxu0 0.0
    %193 = vmatpush1.msra.mxu0 0.0
    %194 = vmatprep.subr.mxu0 0.0
    %195 = vmatpush1.msra.mxu0 0.0
    %196 = vmatprep.subr.mxu0 0.0
    %197 = vmatpush1.msra.mxu0 0.0
    %198 = vmatprep.subr.mxu0 0.0
    %199 = vmatpush1.msra.mxu0 0.0
    %200 = vmatprep.subr.mxu0 0.0
    %201 = vmatpush1.msra.mxu0 0.0
    %202 = vmatprep.subr.mxu0 0.0
    %203 = vmatpush1.msra.mxu0 %v166
    %204 = vmatprep.subr.mxu0 0.0
    %205 = vmatpush1.msra.mxu0 %v165
    %206 = vmatprep.subr.mxu0 0.0
    %207 = vmatpush1.msra.mxu0 %v164
    %208 = vmatprep.subr.mxu0 0.0
    %209 = vmatpush1.msra.mxu0 %v163
    %210 = vmatprep.subr.mxu0 0.0
    %211 = vmatpush2.msra.mxu0 0.0
    %212 = vmatprep.subr.mxu0 0.0
    %213 = vmatpush2.msra.mxu0 0.0
    %214 = vmatprep.subr.mxu0 0.0
    %215 = vmatpush2.msra.mxu0 0.0
    %216 = vmatprep.subr.mxu0 0.0
    %217 = vmatpush2.msra.mxu0 0.0
    %218 = vmatprep.subr.mxu0 0.0
    %219 = vmatpush2.msra.mxu0 0.0
    %220 = vmatprep.subr.mxu0 0.0
    %221 = vmatpush2.msra.mxu0 0.0
    %222 = vmatprep.subr.mxu0 0.0
    %223 = vmatpush2.msra.mxu0 0.0
    %224 = vmatprep.subr.mxu0 0.0
    %225 = vmatpush2.msra.mxu0 0.0
    %226 = vmatprep.subr.mxu0 0.0
    %227 = vmatpush2.msra.mxu0 0.0
    %228 = vmatprep.subr.mxu0 0.0
    %229 = vmatpush2.msra.mxu0 0.0
    %230 = vmatprep.subr.mxu0 0.0
    %231 = vmatpush2.msra.mxu0 0.0
    %232 = vmatprep.subr.mxu0 0.0
    %233 = vmatpush2.msra.mxu0 0.0
    %234 = vmatprep.subr.mxu0 0.0
    %235 = vmatpush2.msra.mxu0 0.0
    %236 = vmatprep.subr.mxu0 0.0
    %237 = vmatpush2.msra.mxu0 0.0
    %238 = vmatprep.subr.mxu0 0.0
    %239 = vmatpush2.msra.mxu0 0.0
    %240 = vmatprep.subr.mxu0 0.0
    %241 = vmatpush2.msra.mxu0 0.0
    %242 = vmatprep.mubr.f32.mxu0 0.0
    %243 = vmatmul.mubr.f32.gmra.mxu0 %v176
    %v244 = vpop.f32.mrf.mxu0
    %v245 = vadd.f32 %v172, %v244
    %v246 = vpop.f32.mrf.mxu0
    %247 = vdwg.mxu0
    %v248 = vmax.f32 %v245, 0.0
    %v249 = vld [vmem:[%s6] sm:$0xff]
    %v250 = vld [vmem:[%s6 + $0x8] sm:$0xff]
    %v251 = vld [vmem:[%s6 + $0x10] sm:$0xff]
    %v252 = vld [vmem:[%s6 + $0x18] sm:$0xff]
    %v253 = vld [vmem:[%s7] sm:$0x1]
    %v255 = vlaneseq
    %v256 = vshrl.u32 %v255, 7
    %v257 = vsub.s32 0, %v256
    %v258 = vrot.slane %v253, %v257
    %v261 = vsel %vm174, %v248, 0
    %263 = vmatprep.subr.mxu0 0.0
    %264 = vmatpush1.msra.mxu0 0.0
    %265 = vmatprep.subr.mxu0 0.0
    %266 = vmatpush1.msra.mxu0 0.0
    %267 = vmatprep.subr.mxu0 0.0
    %268 = vmatpush1.msra.mxu0 0.0
    %269 = vmatprep.subr.mxu0 0.0
    %270 = vmatpush1.msra.mxu0 0.0
    %271 = vmatprep.subr.mxu0 0.0
    %272 = vmatpush1.msra.mxu0 0.0
    %273 = vmatprep.subr.mxu0 0.0
    %274 = vmatpush1.msra.mxu0 0.0
    %275 = vmatprep.subr.mxu0 0.0
    %276 = vmatpush1.msra.mxu0 0.0
    %277 = vmatprep.subr.mxu0 0.0
    %278 = vmatpush1.msra.mxu0 0.0
    %279 = vmatprep.subr.mxu0 0.0
    %280 = vmatpush1.msra.mxu0 0.0
    %281 = vmatprep.subr.mxu0 0.0
    %282 = vmatpush1.msra.mxu0 0.0
    %283 = vmatprep.subr.mxu0 0.0
    %284 = vmatpush1.msra.mxu0 0.0
    %285 = vmatprep.subr.mxu0 0.0
    %286 = vmatpush1.msra.mxu0 0.0
    %287 = vmatprep.subr.mxu0 0.0
    %288 = vmatpush1.msra.mxu0 %v252
    %289 = vmatprep.subr.mxu0 0.0
    %290 = vmatpush1.msra.mxu0 %v251
    %291 = vmatprep.subr.mxu0 0.0
    %292 = vmatpush1.msra.mxu0 %v250
    %293 = vmatprep.subr.mxu0 0.0
    %294 = vmatpush1.msra.mxu0 %v249
    %295 = vmatprep.subr.mxu0 0.0
    %296 = vmatpush2.msra.mxu0 0.0
    %297 = vmatprep.subr.mxu0 0.0
    %298 = vmatpush2.msra.mxu0 0.0
    %299 = vmatprep.subr.mxu0 0.0
    %300 = vmatpush2.msra.mxu0 0.0
    %301 = vmatprep.subr.mxu0 0.0
    %302 = vmatpush2.msra.mxu0 0.0
    %303 = vmatprep.subr.mxu0 0.0
    %304 = vmatpush2.msra.mxu0 0.0
    %305 = vmatprep.subr.mxu0 0.0
    %306 = vmatpush2.msra.mxu0 0.0
    %307 = vmatprep.subr.mxu0 0.0
    %308 = vmatpush2.msra.mxu0 0.0
    %309 = vmatprep.subr.mxu0 0.0
    %310 = vmatpush2.msra.mxu0 0.0
    %311 = vmatprep.subr.mxu0 0.0
    %312 = vmatpush2.msra.mxu0 0.0
    %313 = vmatprep.subr.mxu0 0.0
    %314 = vmatpush2.msra.mxu0 0.0
    %315 = vmatprep.subr.mxu0 0.0
    %316 = vmatpush2.msra.mxu0 0.0
    %317 = vmatprep.subr.mxu0 0.0
    %318 = vmatpush2.msra.mxu0 0.0
    %319 = vmatprep.subr.mxu0 0.0
    %320 = vmatpush2.msra.mxu0 0.0
    %321 = vmatprep.subr.mxu0 0.0
    %322 = vmatpush2.msra.mxu0 0.0
    %323 = vmatprep.subr.mxu0 0.0
    %324 = vmatpush2.msra.mxu0 0.0
    %325 = vmatprep.subr.mxu0 0.0
    %326 = vmatpush2.msra.mxu0 0.0
    %327 = vmatprep.mubr.f32.mxu0 0.0
    %328 = vmatmul.mubr.f32.gmra.mxu0 %v261
    %v329 = vpop.f32.mrf.mxu0
    %v330 = vadd.f32 %v258, %v329
    %v331 = vpop.f32.mrf.mxu0
    %332 = vdwg.mxu0
    %vm333 = vcmask 23552
    %334 = vst.msk [vmem:[%s8] sm:$0xff] %vm333, %v330
    // Predicated region
    $region38: #{tpu_custom_call.1} parent=1 // pred_check
      _
    $region39: #{tpu_custom_call.1} parent=1 // pred_check_branch
      %336 = sbr.rel (0) target = $region41
    $region40: #{tpu_custom_call.1} parent=1 // pred_region
      _
    $region41: #{tpu_custom_call.1} parent=1 // pred_fallthru
      _
    // Predicated region
    $region42: #{tpu_custom_call.1} parent=1 // pred_check
      _
    $region43: #{tpu_custom_call.1} parent=1 // pred_check_branch
      %338 = sbr.rel (0) target = $region45
    $region44: #{tpu_custom_call.1} parent=1 // pred_region
      _
    $region45: #{tpu_custom_call.1} parent=1 // pred_fallthru
      _
    %339 = vsyncpa [#allocation5], 1
    %340 = vsyncpa [#allocation7], 1

</llo_original>
